<compile_context>
chip_gen: v5e
topology: v5e:2x2
jax: 0.10.0
libtpu: 0.0.40
codegen_flags: <defaults>
</compile_context>

<pallas_src>
import functools

import jax
import jax.numpy as jnp
from jax import lax
from jax.experimental import pallas as pl
from jax.experimental.pallas import tpu as pltpu


_LANE = 128
_TK_ALIGN = 256      # full MXU width on v6e/v7x (2x v5e); lane-aligned
_TK_MAX = 8192       # upper cap on the K tile (review: raise from 2048)


# --------------------------------------------------------------------------
# Kernel: K-tiled partial Gram accumulation (one resident (M, M) per core)
# --------------------------------------------------------------------------
def _gram_partial_kernel(feat_ref, g_ref, *, rem, overlap, n_k_per, n_splits):
    """grid = (n_splits, n_k_per); axis 0 is "parallel" (v7x megacore K split),
    axis 1 walks this core's K tiles ("arbitrary" reduction).

    feat_ref : (M, TK)    current K tile of the feature matrix
    g_ref    : (1, M, M)  this core's resident partial Gram (f32 accumulator)
    """
    c = pl.program_id(0)
    k = pl.program_id(1)

    @pl.when(k == 0)
    def _():
        g_ref[...] = jnp.zeros_like(g_ref)

    def _accumulate():
        f = feat_ref[...]
        if rem:
            # The global last K tile is ragged: its tail columns in VMEM hold
            # unspecified padding.  Zero them (zero columns do not change
            # F @ F^T).  This replaces the old wrapper-level jnp.pad copy.
            is_last = jnp.logical_and(c == n_splits - 1, k == n_k_per - 1)
            valid = jnp.where(is_last, rem, f.shape[1])
            col = lax.broadcasted_iota(jnp.int32, f.shape, 1)
            f = jnp.where(col < valid, f, jnp.zeros_like(f))
        # F @ F^T via a last-axis/last-axis contraction: no per-step transpose.
        g_ref[0] += lax.dot_general(
            f, f,
            dimension_numbers=(((1,), (1,)), ((), ())),
            preferred_element_type=jnp.float32,
        )

    if overlap:
        # The per-core tile ranges overlap by `overlap` tiles (rectangular
        # grid with an odd total tile count): cores > 0 skip their first
        # `overlap` iterations so no tile is double-counted.
        @pl.when(jnp.logical_or(c == 0, k >= overlap))
        def _():
            _accumulate()
    else:
        _accumulate()


# --------------------------------------------------------------------------
# Tiling / VMEM planning (generation-aware)
# --------------------------------------------------------------------------
def _tpu_vmem_bytes():
    try:
        vmem = int(getattr(pltpu.get_tpu_info(), "vmem_capacity_bytes", 0))
        if vmem > 0:
            return vmem
    except Exception:
        pass
    return 64 * 1024 * 1024   # conservative default = v7x per-core VMEM


def _cdiv(a, b):
    return -(-a // b)


def _plan(M, K, feat_bytes):
    """Returns (tk, n_k, n_splits, n_k_per, overlap, rem, vmem_limit) or None
    if the resident (M, M) Gram does not fit the VMEM budget."""
    vmem = _tpu_vmem_bytes()
    budget = vmem // 2                       # ~64 MiB on v5e/v6e, ~32 MiB on v7x
    fixed = 2 * M * M * 4                    # resident partial-Gram block (+ writeback slack)
    avail = budget - fixed
    if avail < 2 * M * _TK_ALIGN * feat_bytes:
        return None
    tk = (avail // (2 * M * feat_bytes)) // _TK_ALIGN * _TK_ALIGN   # double-buffered feature tile
    tk = min(tk, _TK_MAX, (K // _TK_ALIGN) * _TK_ALIGN)             # never wider than K
    tk = max(tk, _TK_ALIGN)

    n_k = _cdiv(K, tk)
    n_splits = 2 if n_k >= 2 else 1          # engage both v7x TensorCores on the K split
    n_k_per = _cdiv(n_k, n_splits)
    overlap = n_splits * n_k_per - n_k       # 0 or 1
    rem = K % tk                             # ragged tail of the global last tile (0 = exact)

    need = 2 * M * tk * feat_bytes + 2 * M * M * 4 + (1 << 20)
    vmem_limit = int(min(max(need * 5 // 4, 32 << 20), vmem * 3 // 4))
    return tk, n_k, n_splits, n_k_per, overlap, rem, vmem_limit


# --------------------------------------------------------------------------
# Pallas-backed raw Gram: F @ F^T (unnormalized), with custom VJP
# --------------------------------------------------------------------------
def _gram_raw_impl(features):
    """features: (M, K) f32 or bf16.  Returns F @ F^T as f32 (M, M)."""
    M, K = features.shape
    feat_bytes = jnp.dtype(features.dtype).itemsize

    if K < _TK_ALIGN:
        # Tiny lane pad only (a few KiB); large ragged K is masked in-kernel,
        # so the big feature matrix is never copied/padded in HBM.
        features = jnp.pad(features, ((0, 0), (0, _TK_ALIGN - K)))
        K = _TK_ALIGN

    plan = _plan(M, K, feat_bytes)
    if plan is None:
        # Resident (M, M) Gram would not fit VMEM; degrade gracefully.
        # TODO(synk): (i, j) output-tiled Pallas fallback for very large M.
        f32 = features.astype(jnp.float32)
        return jnp.dot(f32, f32.T, precision=lax.Precision.HIGHEST)

    tk, n_k, n_splits, n_k_per, overlap, rem, vmem_limit = plan
    stride = n_k_per - overlap   # per-core starting-tile stride along K

    kernel = functools.partial(
        _gram_partial_kernel,
        rem=rem, overlap=overlap, n_k_per=n_k_per, n_splits=n_splits)

    partials = pl.pallas_call(
        kernel,
        out_shape=jax.ShapeDtypeStruct((n_splits, M, M), jnp.float32),
        grid_spec=pltpu.PrefetchScalarGridSpec(
            num_scalar_prefetch=0,
            grid=(n_splits, n_k_per),
            in_specs=[
                # feature K tile; block index = this core's global tile index
                pl.BlockSpec((M, tk), lambda c, k: (0, c * stride + k)),
            ],
            out_specs=pl.BlockSpec((1, M, M), lambda c, k: (c, 0, 0)),
        ),
        compiler_params=pltpu.CompilerParams(
            dimension_semantics=("parallel", "arbitrary"),
            vmem_limit_bytes=vmem_limit,
        ),
        cost_estimate=pl.CostEstimate(
            flops=2 * M * M * K,
            transcendentals=0,
            bytes_accessed=feat_bytes * M * K + 4 * n_splits * M * M,
        ),
    )(features)

    # Trivial epilogue: sum the per-core partial Grams (one (M, M) add).
    return partials.sum(axis=0)


@jax.custom_vjp
def _gram_raw(features):
    return _gram_raw_impl(features)


def _gram_raw_fwd(features):
    return _gram_raw_impl(features), features


def _gram_raw_bwd(features, g_bar):
    # d/dF [F @ F^T] with cotangent Gbar is (Gbar + Gbar^T) @ F.
    gb = (g_bar + g_bar.T).astype(jnp.float32)
    grad = jnp.dot(gb, features.astype(jnp.float32),
                   precision=lax.Precision.HIGHEST)
    return (grad.astype(features.dtype),)


_gram_raw.defvjp(_gram_raw_fwd, _gram_raw_bwd)


# --------------------------------------------------------------------------
# Module-level API (mirrors the PyTorch module)
# --------------------------------------------------------------------------
def gram_matrix(x, *, use_bf16_features=False):
    """Pallas-backed gram_matrix for an NCHW tensor x (returns f32 (a*b, a*b))."""
    a, b, c, d = x.shape
    compute_dtype = jnp.bfloat16 if use_bf16_features else jnp.float32
    features = x.reshape(a * b, c * d).astype(compute_dtype)
    g = _gram_raw(features)
    return g / float(a * b * c * d)


class StyleLoss:
    """JAX/Pallas port of the PyTorch StyleLoss module (forward pass).

    Note: self.loss is Python-side state (mirrors the nn.Module); for
    jit/scan-friendly use call gram_matrix directly in a functional loss.
    """

    def __init__(self, target_feature, *, use_bf16_features=False):
        self.use_bf16_features = use_bf16_features
        self.target = lax.stop_gradient(
            gram_matrix(target_feature, use_bf16_features=use_bf16_features))
        self.loss = None

    def forward(self, input_):
        g = gram_matrix(input_, use_bf16_features=self.use_bf16_features)
        diff = g - self.target
        self.loss = jnp.mean(diff * diff)   # F.mse_loss (reduction='mean')
        return input_                       # forward returns the input unchanged

    __call__ = forward


# --------------------------------------------------------------------------
# Reference + test
# --------------------------------------------------------------------------
def _reference_gram(x):
    a, b, c, d = x.shape
    f = x.reshape(a * b, c * d).astype(jnp.float32)
    return jnp.dot(f, f.T, precision=lax.Precision.HIGHEST) / (a * b * c * d)


if __name__ == "__main__":
    key = jax.random.PRNGKey(0)
    k1, k2, k3, k4, k5 = jax.random.split(key, 5)

    # small NCHW shapes: batch=2, channels=4, spatial=16x16 -> features (8, 256)
    target_feature = jax.random.normal(k1, (2, 4, 16, 16), dtype=jnp.float32)
    x = jax.random.normal(k2, (2, 4, 16, 16), dtype=jnp.float32)

    module = StyleLoss(target_feature)
    out = jax.block_until_ready(module(x))
    loss = jax.block_until_ready(module.loss)

    g_ref = _reference_gram(x)
    t_ref = _reference_gram(target_feature)
    loss_ref = jnp.mean((g_ref - t_ref) ** 2)
    assert out.shape == x.shape and jnp.allclose(out, x)
    assert jnp.allclose(loss, loss_ref, rtol=1e-5, atol=1e-6), (loss, loss_ref)

    # ragged tiny K (< one lane tile): H*W = 100
    xr = jax.random.normal(k3, (1, 8, 10, 10), dtype=jnp.float32)
    assert jnp.allclose(jax.block_until_ready(gram_matrix(xr)),
                        _reference_gram(xr), rtol=1e-5, atol=1e-6)

    # ragged K >= one tile: exercises the in-kernel tail mask + 2-way K split
    xs = jax.random.normal(k4, (1, 16, 18, 18), dtype=jnp.float32)   # K = 324
    assert jnp.allclose(jax.block_until_ready(gram_matrix(xs)),
                        _reference_gram(xs), rtol=1e-5, atol=1e-6)

    # odd tile count: exercises the overlap-skip path of the K split (n_k = 3)
    xo = jax.random.normal(k5, (1, 8, 160, 130), dtype=jnp.float32)  # K = 20800
    assert jnp.allclose(jax.block_until_ready(gram_matrix(xo)),
                        _reference_gram(xo), rtol=1e-4, atol=1e-5)

    # opt-in bf16 feature feeding (faster, slightly different numerics)
    g_bf16 = jax.block_until_ready(gram_matrix(x, use_bf16_features=True))
    assert jnp.allclose(g_bf16, g_ref, rtol=3e-2, atol=3e-2)

    # gradient smoke test through the custom_vjp'd Pallas Gram
    grad_fn = jax.grad(lambda y: jnp.sum(gram_matrix(y)))
    grad_ref_fn = jax.grad(lambda y: jnp.sum(_reference_gram(y)))
    g1 = jax.block_until_ready(grad_fn(x))
    g2 = grad_ref_fn(x)
    assert jnp.allclose(g1, g2, rtol=1e-5, atol=1e-6)

    print("KERNEL_OK")
</pallas_src>

<mosaic_0001>
module attributes {stable_mosaic.version = 11 : i64} {
  func.func @_gram_partial_kernel(%arg0: i32, %arg1: i32, %arg2: memref<8x256xf32, #tpu.memory_space<vmem>>, %arg3: memref<1x8x8xf32, #tpu.memory_space<vmem>>) attributes {dimension_semantics = [#tpu.dimension_semantics<parallel>, #tpu.dimension_semantics<arbitrary>], iteration_bounds = array<i64: 1, 1>, scalar_prefetch = 0 : i64, scratch_operands = 0 : i64, tpu.core_type = #tpu.core_type<tc>, window_params = [{transform_indices = @transform_0, window_bounds = array<i64: 8, 256>}, {transform_indices = @transform_1, window_bounds = array<i64: 1, 8, 8>}]} {
    %c0_i32 = arith.constant 0 : i32
    %0 = arith.cmpi eq, %arg1, %c0_i32 : i32
    %1 = arith.extui %0 : i1 to i32
    %c0_i32_0 = arith.constant 0 : i32
    %2 = arith.cmpi ne, %1, %c0_i32_0 : i32
    scf.if %2 {
      %cst_8 = arith.constant 0.000000e+00 : f32
      %11 = vector.broadcast %cst_8 : f32 to vector<1x8x8xf32>
      %c0_9 = arith.constant 0 : index
      %c0_10 = arith.constant 0 : index
      %c0_11 = arith.constant 0 : index
      %12 = vector.load %arg3[%c0_9, %c0_10, %c0_11] : memref<1x8x8xf32, #tpu.memory_space<vmem>>, vector<1x8x8xf32>
      tpu.vector_store %arg3[%c0_9, %c0_10, %c0_11], %11 {strides = array<i32>} : memref<1x8x8xf32, #tpu.memory_space<vmem>>, vector<1x8x8xf32>,
    } else {
    }
    %c0 = arith.constant 0 : index
    %c0_1 = arith.constant 0 : index
    %3 = vector.load %arg2[%c0, %c0_1] : memref<8x256xf32, #tpu.memory_space<vmem>>, vector<8x256xf32>
    %c0_2 = arith.constant 0 : index
    %c0_3 = arith.constant 0 : index
    %c0_4 = arith.constant 0 : index
    %4 = vector.load %arg3[%c0_2, %c0_3, %c0_4] : memref<1x8x8xf32, #tpu.memory_space<vmem>>, vector<1x8x8xf32>
    %5 = vector.shape_cast %4 : vector<1x8x8xf32> to vector<8x8xf32>
    %cst = arith.constant dense<0.000000e+00> : vector<8x8xf32>
    %6 = tpu.matmul %3, %3, %cst {dimension_numbers = #tpu.dot_dimension_numbers<[1], [1], [0], [0], [0, 0, 1, 0], [], []>} : vector<8x256xf32>, vector<8x256xf32>, vector<8x8xf32> -> vector<8x8xf32>
    %7 = arith.addf %5, %6 : vector<8x8xf32>
    %c0_5 = arith.constant 0 : index
    %c0_6 = arith.constant 0 : index
    %c0_7 = arith.constant 0 : index
    %8 = vector.load %arg3[%c0_5, %c0_6, %c0_7] : memref<1x8x8xf32, #tpu.memory_space<vmem>>, vector<1x8x8xf32>
    %9 = vector.shape_cast %8 : vector<1x8x8xf32> to vector<8x8xf32>
    %10 = vector.shape_cast %7 : vector<8x8xf32> to vector<1x8x8xf32>
    tpu.vector_store %arg3[%c0_5, %c0_6, %c0_7], %10 {strides = array<i32>} : memref<1x8x8xf32, #tpu.memory_space<vmem>>, vector<1x8x8xf32>,
    return
  }
  func.func @transform_0(%arg0: i32, %arg1: i32) -> (i32, i32) {
    %c1_i32 = arith.constant 1 : i32
    %0 = arith.muli %arg0, %c1_i32 : i32
    %1 = arith.addi %0, %arg1 : i32
    %c0_i32 = arith.constant 0 : i32
    %c0_i32_0 = arith.constant 0 : i32
    return %c0_i32, %1 : i32, i32
  }
  func.func @transform_1(%arg0: i32, %arg1: i32) -> (i32, i32, i32) {
    %c0_i32 = arith.constant 0 : i32
    %c0_i32_0 = arith.constant 0 : i32
    %c0_i32_1 = arith.constant 0 : i32
    return %arg0, %c0_i32, %c0_i32_0 : i32, i32, i32
  }
}

</mosaic_0001>

<llo_original>
// kernel: tpu_custom_call.1
$region0: #{tpu_custom_call.1}
  #allocation0 [shape = 'u32[]', space=smem, size = 0x4, offset = 0x4, fixed_abs, tag = 'smem constant byte address 0x4 - core index']
  #allocation1 [shape = 'u32[72,128]{1,0:T(1,128)}', space=vmem, size = 0x9000, scoped, tag = 'internal scratch']
  %s0 = inlined_call_operand.hbm [shape: f32[8,256], index: 0, kind: input, shape index: {}]
  %s1 = inlined_call_operand.hbm [shape: f32[1,8,8], index: 1, kind: output, shape index: {}]
  %s2 = sld [smem:[#allocation0]]
  $region22: #{tpu_custom_call.1} parent=0
    _
  %s4 = ssub.s32 1, %s2
  %s5 = scalar_select 0, %s4, %s2
  $region1: #{tpu_custom_call.1} parent=0
    #allocation2 [shape = 'u8[8192]{0}', space=vmem, size = 0x2000, scoped, tag = 'input window, operand 0, single buffered']
    #allocation3 [shape = 's32[1]{0}', space=sflag, size = 0x4, scoped, tag = 'scoped memory for tpu_custom_call.1']
    #allocation4 [shape = 's32[1]{0}', space=sflag, size = 0x4, scoped, tag = 'scoped memory for tpu_custom_call.1']
    #allocation5 [shape = 'u8[4096]{0}', space=vmem, size = 0x1000, scoped, tag = 'output window, operand 0, single buffered']
    %6 = vsyncpa [#allocation3], 0
    %7 = vsyncpa [#allocation4], 0
    // Predicated region
    $region2: #{tpu_custom_call.1} parent=1 // pred_check
      _
    $region3: #{tpu_custom_call.1} parent=1 // pred_check_branch
      %9 = sbr.rel (0) target = $region5
    $region4: #{tpu_custom_call.1} parent=1 // pred_region
      %s10 = sadd.s32 0, 0
      %s11 = smul.u32 2, %s10
      %13 = vsyncadd [#allocation3], 0
      %s14 = smul.addr %s11, 8
      %s15 = scalar_lea.hbm %s0, %s14
      %s17 = sshll.u32 %s15, 4
      %s18 = int_to_ptr.hbm [resolvable:$true] %s17
      %s19 = sshll.u32 [#allocation2], 4
      %s20 = int_to_ptr.vmem [resolvable:$true] %s19
      %22 = dma.hbm_to_vmem [thread:$0]  %s18, 256, %s20, [#allocation3]
    $region5: #{tpu_custom_call.1} parent=1 // pred_fallthru
      _
    // Predicated region
    $region6: #{tpu_custom_call.1} parent=1 // pred_check
      _
    $region7: #{tpu_custom_call.1} parent=1 // pred_check_branch
      %24 = sbr.rel (0) target = $region9
    $region8: #{tpu_custom_call.1} parent=1 // pred_region
      %26 = dma.done [#allocation3], 256
    $region9: #{tpu_custom_call.1} parent=1 // pred_fallthru
      _
    %s27 = sadd.s32 0, 0
    %s28 = smul.u32 2, %s27
    %p29 = scmp.eq.s32.totalorder 0, 0
    // Predicated region
    $region10: #{tpu_custom_call.1} parent=1 // pred_check
      %p30 = pneg %p29
    $region11: #{tpu_custom_call.1} parent=1 // pred_check_branch
      %32 = sbr.rel (%p30) target = $region13
    $region12: #{tpu_custom_call.1} parent=1 // pred_region
      %vm33 = vcmask 64512
      %34 = vst.msk [vmem:[#allocation5] sm:$0xff] %vm33, 0.0
    $region13: #{tpu_custom_call.1} parent=1 // pred_fallthru
      _
    %v35 = vld [vmem:[#allocation2] sm:$0xff]
    %v36 = vld [vmem:[#allocation2 + $0x8] sm:$0xff]
    %v37 = vld [vmem:[#allocation5] sm:$0xff]
    %38 = vmatpush.xpose.msra.mxu0 0.0
    %39 = vmatpush.xpose.msra.mxu0 0.0
    %40 = vmatpush.xpose.msra.mxu0 0.0
    %41 = vmatpush.xpose.msra.mxu0 0.0
    %42 = vmatpush.xpose.msra.mxu0 0.0
    %43 = vmatpush.xpose.msra.mxu0 0.0
    %44 = vmatpush.xpose.msra.mxu0 0.0
    %45 = vmatpush.xpose.msra.mxu0 0.0
    %46 = vmatpush.xpose.msra.mxu0 0.0
    %47 = vmatpush.xpose.msra.mxu0 0.0
    %48 = vmatpush.xpose.msra.mxu0 0.0
    %49 = vmatpush.xpose.msra.mxu0 0.0
    %50 = vmatpush.xpose.msra.mxu0 0.0
    %51 = vmatpush.xpose.msra.mxu0 0.0
    %52 = vmatpush.xpose.msra.mxu0 0.0
    %53 = vmatpush.xpose.msra.mxu0 %v35
    %54 = vmatmul.f32.gmra.mxu0 %v35
    %v55 = vpop.f32.mrf.mxu0
    %v56 = vadd.f32 0.0, %v55
    %57 = vdwg.mxu0
    %58 = vmatpush.xpose.msra.mxu0 0.0
    %59 = vmatpush.xpose.msra.mxu0 0.0
    %60 = vmatpush.xpose.msra.mxu0 0.0
    %61 = vmatpush.xpose.msra.mxu0 0.0
    %62 = vmatpush.xpose.msra.mxu0 0.0
    %63 = vmatpush.xpose.msra.mxu0 0.0
    %64 = vmatpush.xpose.msra.mxu0 0.0
    %65 = vmatpush.xpose.msra.mxu0 0.0
    %66 = vmatpush.xpose.msra.mxu0 0.0
    %67 = vmatpush.xpose.msra.mxu0 0.0
    %68 = vmatpush.xpose.msra.mxu0 0.0
    %69 = vmatpush.xpose.msra.mxu0 0.0
    %70 = vmatpush.xpose.msra.mxu0 0.0
    %71 = vmatpush.xpose.msra.mxu0 0.0
    %72 = vmatpush.xpose.msra.mxu0 0.0
    %73 = vmatpush.xpose.msra.mxu0 %v36
    %74 = vmatmul.f32.gmra.mxu0 %v36
    %v75 = vpop.f32.mrf.mxu0
    %v76 = vadd.f32 %v56, %v75
    %77 = vdwg.mxu0
    %v78 = vadd.f32 %v37, %v76
    %vm79 = vcmask 64512
    %80 = vst.msk [vmem:[#allocation5] sm:$0xff] %vm79, %v78
    // Predicated region
    $region14: #{tpu_custom_call.1} parent=1 // pred_check
      _
    $region15: #{tpu_custom_call.1} parent=1 // pred_check_branch
      %82 = sbr.rel (0) target = $region17
    $region16: #{tpu_custom_call.1} parent=1 // pred_region
      %84 = vsyncadd [#allocation4], 0
      %s86 = sshll.u32 [#allocation5], 4
      %s87 = int_to_ptr.vmem [resolvable:$true] %s86
      %s88 = sshll.u32 %s1, 4
      %s89 = int_to_ptr.hbm [resolvable:$true] %s88
      %91 = dma.vmem_to_hbm [thread:$0]  %s87, 128, %s89, [#allocation4]
    $region17: #{tpu_custom_call.1} parent=1 // pred_fallthru
      _
    // Predicated region
    $region18: #{tpu_custom_call.1} parent=1 // pred_check
      _
    $region19: #{tpu_custom_call.1} parent=1 // pred_check_branch
      %93 = sbr.rel (0) target = $region21
    $region20: #{tpu_custom_call.1} parent=1 // pred_region
      %95 = dma.done [#allocation4], 128
    $region21: #{tpu_custom_call.1} parent=1 // pred_fallthru
      _
    %96 = vsyncpa [#allocation3], 1
    %97 = vsyncpa [#allocation4], 1

</llo_original>
